<compile_context>
chip_gen: v5e
topology: v5e:2x2
jax: 0.10.0
libtpu: 0.0.40
codegen_flags: <defaults>
</compile_context>

<pallas_src>
import functools

import jax
import jax.numpy as jnp
from jax import lax
from jax.experimental import pallas as pl
from jax.experimental.pallas import tpu as pltpu


_LANE = 128  # vreg lane width


def _neg_inf(dtype):
    if jnp.issubdtype(dtype, jnp.floating):
        return jnp.array(-jnp.inf, dtype)
    return jnp.array(jnp.iinfo(dtype).min, dtype)


def _vmem_params():
    """Generation-aware VMEM sizing.

    budget: bytes we aim to spend on pipeline tiles + in-kernel intermediates
            (~half the declared limit, so sublane-rounding TB never busts it).
    limit:  value passed to CompilerParams(vmem_limit_bytes=...).
    v5e/v6e (128 MiB physical) -> limit ~100 MiB, budget ~50 MiB.
    v7x (64 MiB per TensorCore) -> limit ~56 MiB, budget ~28 MiB.
    """
    try:
        cap = int(pltpu.get_tpu_info().vmem_capacity_bytes)
        if cap <= 0:
            cap = 64 * 1024 * 1024
    except Exception:  # conservative default = v7x's 64 MiB per TensorCore
        cap = 64 * 1024 * 1024
    limit = int(max(min(cap - 8 * 1024 * 1024, 100 * 1024 * 1024), 16 * 1024 * 1024))
    budget = limit // 2
    return budget, limit


# ---------------------------------------------------------------------------
# Fused conv (window over L) + bias + max-over-L + ReLU
# ---------------------------------------------------------------------------
def _conv_pool_relu_kernel(x_ref, w_ref, b_ref, o_ref, *, K, P, L, L_out):
    """x_ref: (TB, L, W) embedding tile; w_ref: (K, W, C); b_ref: (1, C);
    o_ref: (TB, C) = ReLU(max_l Conv(x) + bias)."""
    x = x_ref[...]
    TB, _, W = x.shape
    C = o_ref.shape[-1]

    acc = None
    for k in range(K):
        d = k - P  # input-row offset for this window tap
        if d < 0:
            pad = jnp.zeros((TB, -d, W), x.dtype)
            xk = jnp.concatenate([pad, x[:, :L + d, :]], axis=1)
        elif d == 0:
            xk = x
        else:
            pad = jnp.zeros((TB, d, W), x.dtype)
            xk = jnp.concatenate([x[:, d:, :], pad], axis=1)
        # (TB*L, W) @ (W, C) on the MXU with an f32 accumulator.
        yk = jnp.dot(xk.reshape(TB * L, W), w_ref[k],
                     preferred_element_type=jnp.float32)
        acc = yk if acc is None else acc + yk

    acc = acc.reshape(TB, L, C)
    if L_out < L:  # conv output shorter than L: mask invalid positions
        pos = lax.broadcasted_iota(jnp.int32, acc.shape, 1)
        acc = jnp.where(pos < L_out, acc, -jnp.inf)

    pooled = jnp.max(acc, axis=1) + b_ref[...]   # bias constant over L -> add after max
    o_ref[...] = jnp.maximum(pooled, 0.0).astype(o_ref.dtype)   # fused ReLU


def cnn_sentence_features(sen_embedding, conv_w, conv_b, hidden_size):
    """Runnable slice of CNN.forward in ONE Pallas kernel:
    unsqueeze -> _CNN (Conv2d, padding=(1,0)) -> _MaxPooling -> ReLU.

    sen_embedding: (B, max_length, word_size + 2*pos_size)
    conv_w: (out_channels, 1, window_size, in_width)   (PyTorch OIHW)
    conv_b: (out_channels,)
    """
    B, L, W = sen_embedding.shape
    C, in_ch, K, Wk = conv_w.shape
    assert in_ch == 1 and Wk == W
    P = 1  # nn.Conv2d padding=(1, 0) in the module
    L_out = L + 2 * P - K + 1
    assert 1 <= L_out <= L, "window_size < 3 (L_out > L) not supported by the fused kernel"

    dtype = sen_embedding.dtype
    itemsize = jnp.dtype(dtype).itemsize
    w = jnp.transpose(conv_w[:, 0, :, :], (1, 2, 0))        # (K, W, C)
    b = conv_b.reshape(1, C).astype(jnp.float32)

    budget, limit = _vmem_params()
    # per batch row: double-buffered input + shifted copy + f32 (L, C) intermediates
    per_row = 4 * L * W * itemsize + 2 * L * C * 4 + 2 * C * itemsize
    const = 2 * (K * W * C * itemsize + C * 4)              # resident weight + bias
    TB = max(1, int((budget - const) // per_row))
    TB = min(TB, B)
    if B >= 16:
        # keep >= 2 blocks on the parallel batch axis so both v7x TCs get work
        TB = min(TB, ((B + 1) // 2 + 7) // 8 * 8)
    if TB < B:
        # output block (TB, C) needs sublane-aligned TB (full-B blocks are exempt);
        # may slightly exceed the budget for pathological L*C but stays under limit.
        TB = max(8, (TB // 8) * 8)

    grid = (pl.cdiv(B, TB),)
    kernel = functools.partial(_conv_pool_relu_kernel, K=K, P=P, L=L, L_out=L_out)

    out = pl.pallas_call(
        kernel,
        out_shape=jax.ShapeDtypeStruct((B, C), dtype),
        grid_spec=pltpu.PrefetchScalarGridSpec(
            num_scalar_prefetch=0,
            grid=grid,
            in_specs=[pl.BlockSpec((TB, L, W), lambda i: (i, 0, 0)),
                      pl.BlockSpec((K, W, C), lambda i: (0, 0, 0)),
                      pl.BlockSpec((1, C), lambda i: (0, 0))],
            out_specs=pl.BlockSpec((TB, C), lambda i: (i, 0)),
        ),
        compiler_params=pltpu.CompilerParams(
            dimension_semantics=("parallel",),
            vmem_limit_bytes=limit,
        ),
        cost_estimate=pl.CostEstimate(
            flops=2 * B * L * K * W * C,
            transcendentals=0,
            bytes_accessed=B * L * W * itemsize + K * W * C * itemsize + B * C * itemsize,
        ),
    )(sen_embedding, w, b)

    # TODO(synk): full CNN.forward also concatenates self.lstm_p(MDP_embedding).mean(1),
    # head and tail before the ReLU, but self.lstm_p is never constructed in the
    # reference module; ReLU is elementwise so applying it per-branch is equivalent.
    return out.reshape(-1, hidden_size)


# ---------------------------------------------------------------------------
# Standalone _MaxPooling (max over dim=2 + view)
# ---------------------------------------------------------------------------
def _maxpool_kernel(x_ref, o_ref, *, L, TL, n_l_blocks):
    """Running max over the sequence axis of a (TB, C, TL) tile.
    grid = (batch blocks, L blocks); the output block index is constant along
    the L axis, so o_ref stays VMEM-resident and acts as the accumulator."""
    li = pl.program_id(1)
    neg = _neg_inf(x_ref.dtype)

    def maybe_mask(chunk, lo, hi):
        # Static check: can this lane range hold an index >= L in the LAST
        # L block?  Only those chunks pay the iota/compare/select.
        if (n_l_blocks - 1) * TL + hi > L:
            lane = lax.broadcasted_iota(jnp.int32, chunk.shape, 2)
            return jnp.where(li * TL + lo + lane < L, chunk, neg)
        return chunk

    nfull = TL // _LANE
    rem = TL % _LANE

    # Combine 128-wide lane chunks elementwise on the VPU (ref sliced per chunk,
    # so only running tile + current chunk live); one lane reduce hits the XLU.
    run = None
    for k in range(nfull):
        lo = k * _LANE
        chunk = maybe_mask(x_ref[:, :, lo:lo + _LANE], lo, lo + _LANE)
        run = chunk if run is None else jnp.maximum(run, chunk)
    m = None if run is None else jnp.max(run, axis=-1)          # (TB, C)
    if rem:
        tail = maybe_mask(x_ref[:, :, nfull * _LANE:TL], nfull * _LANE, TL)
        t = jnp.max(tail, axis=-1)
        m = t if m is None else jnp.maximum(m, t)

    if n_l_blocks == 1:
        o_ref[...] = m                       # single-pass: plain store, no RMW
    else:
        @pl.when(li == 0)
        def _():
            o_ref[...] = m                   # first L block: no -inf init needed

        @pl.when(li > 0)
        def _():
            o_ref[...] = jnp.maximum(o_ref[...], m)


def max_pooling(x, hidden_size, *, tl=None):
    """Pallas equivalent of _MaxPooling.forward(x, hidden_size).
    x: (B, C, L).  Returns jnp.max(x, axis=2).reshape(-1, hidden_size).
    `tl` optionally overrides the L tile (tests of the blocked-L path)."""
    B, C, L = x.shape
    itemsize = jnp.dtype(x.dtype).itemsize
    budget, limit = _vmem_params()

    row_bytes = 2 * C * L * itemsize + 2 * C * itemsize  # dbl-buffered in+out per row
    if tl is not None:
        TL = min(tl, L)
        if TL < L:
            TL = max(_LANE, (TL // _LANE) * _LANE)
    elif min(B, 8) * row_bytes <= budget:
        TL = L          # whole sequence per block: one contiguous DMA per (b, c) row
    else:
        TL = max(_LANE, int(budget // (2 * 8 * C * itemsize)) // _LANE * _LANE)
        TL = min(TL, L)

    per_row = 2 * C * TL * itemsize + 2 * C * itemsize
    TB = max(1, int(budget // per_row))
    TB = min(TB, B)
    if B >= 16:
        TB = min(TB, ((B + 1) // 2 + 7) // 8 * 8)   # >= 2 parallel blocks for v7x's 2 TCs
    if TB < B:
        TB = max(8, (TB // 8) * 8)                  # sublane-aligned (TB, C) output blocks

    n_l_blocks = pl.cdiv(L, TL)
    grid = (pl.cdiv(B, TB), n_l_blocks)
    kernel = functools.partial(_maxpool_kernel, L=L, TL=TL, n_l_blocks=n_l_blocks)

    pooled = pl.pallas_call(
        kernel,
        out_shape=jax.ShapeDtypeStruct((B, C), x.dtype),
        grid_spec=pltpu.PrefetchScalarGridSpec(
            num_scalar_prefetch=0,
            grid=grid,
            in_specs=[pl.BlockSpec((TB, C, TL), lambda b, l: (b, 0, l))],
            out_specs=pl.BlockSpec((TB, C), lambda b, l: (b, 0)),
        ),
        compiler_params=pltpu.CompilerParams(
            dimension_semantics=("parallel", "arbitrary"),
            vmem_limit_bytes=limit,
        ),
        cost_estimate=pl.CostEstimate(
            flops=B * C * L,
            transcendentals=0,
            bytes_accessed=B * C * L * itemsize + B * C * itemsize,
        ),
    )(x)

    # Same semantics as torch .view(-1, hidden_size).
    return pooled.reshape(-1, hidden_size)


if __name__ == "__main__":
    key = jax.random.PRNGKey(0)
    k1, k2, k3, k4, k5 = jax.random.split(key, 5)

    # small shapes consistent with the module's config
    B = 2
    max_length = 16          # sequence axis (reduced over)
    word_size = 8
    pos_size = 2
    window_size = 3
    sen_hidden_size = 32     # config.sen_hidden_size (channel / hidden axis)
    in_width = word_size + 2 * pos_size

    # ---- standalone _MaxPooling kernel (tiny, single-block path) ----------
    x = jax.random.normal(k1, (B, sen_hidden_size, max_length), jnp.float32)
    out = jax.block_until_ready(max_pooling(x, sen_hidden_size))
    ref = jnp.max(x, axis=2).reshape(-1, sen_hidden_size)
    assert out.shape == ref.shape, (out.shape, ref.shape)
    assert jnp.allclose(out, ref), "pooling mismatch (single-block path)"

    # ---- blocked-L accumulator + tail mask + v7x batch-split coverage -----
    x_big = jax.random.normal(k2, (16, 128, 700), jnp.float32)
    out_big = jax.block_until_ready(max_pooling(x_big, 128, tl=256))
    ref_big = jnp.max(x_big, axis=2).reshape(-1, 128)
    assert jnp.allclose(out_big, ref_big), "pooling mismatch (blocked-L path)"

    # ---- fused conv + bias + max-pool + ReLU (single Pallas kernel) -------
    sen_embedding = jax.random.normal(k3, (B, max_length, in_width), jnp.float32)
    conv_w = 0.1 * jax.random.normal(
        k4, (sen_hidden_size, 1, window_size, in_width), jnp.float32)
    conv_b = 0.1 * jax.random.normal(k5, (sen_hidden_size,), jnp.float32)

    feat = jax.block_until_ready(
        cnn_sentence_features(sen_embedding, conv_w, conv_b, sen_hidden_size))

    x4 = sen_embedding[:, None, :, :]
    conv_ref = lax.conv_general_dilated(
        x4, conv_w, (1, 1), ((1, 1), (0, 0)),
        dimension_numbers=("NCHW", "OIHW", "NCHW"),
        precision=lax.Precision.HIGHEST) + conv_b[None, :, None, None]
    feat_ref = jax.nn.relu(
        jnp.max(conv_ref[..., 0], axis=2).reshape(-1, sen_hidden_size))
    assert feat.shape == (B, sen_hidden_size), feat.shape
    assert jnp.allclose(feat, feat_ref, atol=1e-2, rtol=1e-2), "fused CNN branch mismatch"

    print("KERNEL_OK")
</pallas_src>

<mosaic_0001>
module attributes {stable_mosaic.version = 11 : i64} {
  func.func @_maxpool_kernel(%arg0: i32, %arg1: i32, %arg2: memref<2x32x16xf32, #tpu.memory_space<vmem>>, %arg3: memref<2x32xf32, #tpu.memory_space<vmem>>) attributes {dimension_semantics = [#tpu.dimension_semantics<parallel>, #tpu.dimension_semantics<arbitrary>], iteration_bounds = array<i64: 1, 1>, scalar_prefetch = 0 : i64, scratch_operands = 0 : i64, tpu.core_type = #tpu.core_type<tc>, window_params = [{transform_indices = @transform_0, window_bounds = array<i64: 2, 32, 16>}, {transform_indices = @transform_1, window_bounds = array<i64: 2, 32>}]} {
    %c0 = arith.constant 0 : index
    %c0_0 = arith.constant 0 : index
    %c0_1 = arith.constant 0 : index
    %0 = vector.load %arg2[%c0, %c0_0, %c0_1] : memref<2x32x16xf32, #tpu.memory_space<vmem>>, vector<2x32x16xf32>
    %cst = arith.constant dense<0xFF800000> : vector<2x32xf32>
    %1 = vector.multi_reduction <maximumf>, %0, %cst [2] : vector<2x32x16xf32> to vector<2x32xf32>
    %c0_2 = arith.constant 0 : index
    %c0_3 = arith.constant 0 : index
    %2 = vector.load %arg3[%c0_2, %c0_3] : memref<2x32xf32, #tpu.memory_space<vmem>>, vector<2x32xf32>
    tpu.vector_store %arg3[%c0_2, %c0_3], %1 {strides = array<i32>} : memref<2x32xf32, #tpu.memory_space<vmem>>, vector<2x32xf32>,
    return
  }
  func.func @transform_0(%arg0: i32, %arg1: i32) -> (i32, i32, i32) {
    %c0_i32 = arith.constant 0 : i32
    %c0_i32_0 = arith.constant 0 : i32
    return %arg0, %c0_i32, %arg1 : i32, i32, i32
  }
  func.func @transform_1(%arg0: i32, %arg1: i32) -> (i32, i32) {
    %c0_i32 = arith.constant 0 : i32
    %c0_i32_0 = arith.constant 0 : i32
    return %arg0, %c0_i32 : i32, i32
  }
}

</mosaic_0001>

<llo_original>
// kernel: tpu_custom_call.1
$region0: #{tpu_custom_call.1}
  #allocation0 [shape = 'u32[]', space=smem, size = 0x4, offset = 0x4, fixed_abs, tag = 'smem constant byte address 0x4 - core index']
  #allocation1 [shape = 'u32[72,128]{1,0:T(1,128)}', space=vmem, size = 0x9000, scoped, tag = 'internal scratch']
  %s0 = inlined_call_operand.vmem [shape: f32[2,32,16], index: 0, kind: input, shape index: {}]
  %s1 = inlined_call_operand.hbm [shape: f32[2,32], index: 1, kind: output, shape index: {}]
  %s2 = sld [smem:[#allocation0]]
  $region14: #{tpu_custom_call.1} parent=0
    _
  %s4 = ssub.s32 1, %s2
  %s5 = scalar_select 0, %s4, %s2
  $region1: #{tpu_custom_call.1} parent=0
    #allocation2 [shape = 'u8[1024]{0}', space=vmem, size = 0x400, scoped, tag = 'output window, operand 0, single buffered']
    #allocation3 [shape = 's32[1]{0}', space=sflag, size = 0x4, scoped, tag = 'scoped memory for tpu_custom_call.1']
    %6 = vsyncpa [#allocation3], 0
    // Predicated region
    $region2: #{tpu_custom_call.1} parent=1 // pred_check
      _
    $region3: #{tpu_custom_call.1} parent=1 // pred_check_branch
      %8 = sbr.rel (0) target = $region5
    $region4: #{tpu_custom_call.1} parent=1 // pred_region
      _
    $region5: #{tpu_custom_call.1} parent=1 // pred_fallthru
      _
    %v9 = vld [vmem:[%s0] sm:$0xff]
    %v10 = vld [vmem:[%s0 + $0x8] sm:$0xff]
    %v11 = vld [vmem:[%s0 + $0x10] sm:$0xff]
    %v12 = vld [vmem:[%s0 + $0x18] sm:$0xff]
    %v13 = vld [vmem:[%s0 + $0x20] sm:$0xff]
    %v14 = vld [vmem:[%s0 + $0x28] sm:$0xff]
    %v15 = vld [vmem:[%s0 + $0x30] sm:$0xff]
    %v16 = vld [vmem:[%s0 + $0x38] sm:$0xff]
    %vm17 = vcmask 130048
    %v18 = vsel %vm17, %v9, -inf
    %19 = vmax.xlane.f32.xlu0 %v18
    %v20 = vpop.xlane.xlu0 %19
    %v21 = vsel %vm17, %v10, -inf
    %22 = vmax.xlane.f32.xlu0 %v21
    %v23 = vpop.xlane.xlu0 %22
    %v24 = vsel %vm17, %v11, -inf
    %25 = vmax.xlane.f32.xlu0 %v24
    %v26 = vpop.xlane.xlu0 %25
    %v27 = vsel %vm17, %v12, -inf
    %28 = vmax.xlane.f32.xlu0 %v27
    %v29 = vpop.xlane.xlu0 %28
    %v30 = vsel %vm17, %v13, -inf
    %31 = vmax.xlane.f32.xlu0 %v30
    %v32 = vpop.xlane.xlu0 %31
    %v33 = vsel %vm17, %v14, -inf
    %34 = vmax.xlane.f32.xlu0 %v33
    %v35 = vpop.xlane.xlu0 %34
    %v36 = vsel %vm17, %v15, -inf
    %37 = vmax.xlane.f32.xlu0 %v36
    %v38 = vpop.xlane.xlu0 %37
    %v39 = vsel %vm17, %v16, -inf
    %40 = vmax.xlane.f32.xlu0 %v39
    %v41 = vpop.xlane.xlu0 %40
    %v50 = vlaneseq
    %v51 = vand.u32 %v50, 127
    %v52 = vperm.slane %v20, %v51
    %v53 = vadd.s32 %v51, 4294967288
    %v54 = vperm.slane %v23, %v53
    %vm55 = vcmask 130112
    %v56 = vsel %vm55, %v54, %v52
    %v57 = vadd.s32 %v51, 4294967280
    %v58 = vperm.slane %v26, %v57
    %vm59 = vcmask 195712
    %v60 = vsel %vm59, %v58, %v56
    %v61 = vadd.s32 %v51, 4294967272
    %v62 = vperm.slane %v29, %v61
    %vm63 = vcmask 261312
    %v64 = vsel %vm63, %v62, %v60
    %v65 = vperm.slane %v32, %v51
    %v66 = vperm.slane %v35, %v53
    %v67 = vsel %vm55, %v66, %v65
    %v68 = vperm.slane %v38, %v57
    %v69 = vsel %vm59, %v68, %v67
    %v70 = vperm.slane %v41, %v61
    %v71 = vsel %vm63, %v70, %v69
    %vm72 = vcmask 1041409
    %v73 = vsel %vm72, %v71, %v64
    %vm75 = vcmask 254976
    %76 = vst.msk [vmem:[#allocation2] sm:$0x3] %vm75, %v73
    // Predicated region
    $region6: #{tpu_custom_call.1} parent=1 // pred_check
      _
    $region7: #{tpu_custom_call.1} parent=1 // pred_check_branch
      %78 = sbr.rel (0) target = $region9
    $region8: #{tpu_custom_call.1} parent=1 // pred_region
      %80 = vsyncadd [#allocation3], 0
      %s82 = sshll.u32 [#allocation2], 4
      %s83 = int_to_ptr.vmem [resolvable:$true] %s82
      %s84 = sshll.u32 %s1, 4
      %s85 = int_to_ptr.hbm [resolvable:$true] %s84
      %87 = dma.vmem_to_hbm [thread:$0]  %s83, 32, %s85, [#allocation3]
    $region9: #{tpu_custom_call.1} parent=1 // pred_fallthru
      _
    // Predicated region
    $region10: #{tpu_custom_call.1} parent=1 // pred_check
      _
    $region11: #{tpu_custom_call.1} parent=1 // pred_check_branch
      %89 = sbr.rel (0) target = $region13
    $region12: #{tpu_custom_call.1} parent=1 // pred_region
      %91 = dma.done [#allocation3], 32
    $region13: #{tpu_custom_call.1} parent=1 // pred_fallthru
      _
    %92 = vsyncpa [#allocation3], 1

</llo_original>
